<compile_context>
chip_gen: v7x
topology: tpu7x:2x2x1
jax: 0.10.0
libtpu: 0.0.40
codegen_flags: <defaults>
</compile_context>

<pallas_src>
import jax
import jax.numpy as jnp
from jax.experimental import pallas as pl
from jax.experimental.pallas import tpu as pltpu


# ----------------------------- retina (plain JAX glue) -----------------------------

def _denormalize(l, H, W):
    new = (l + 1.0) / 2.0 * jnp.array([H, W], jnp.float32)
    return jnp.floor(new).astype(jnp.int32)


def _extract_patch(x, l, patch_size):
    """x: (B, C, H, W) f32, l: (B, 2) in [-1, 1], patch_size: (ph, pw) python ints."""
    B, C, H, W = x.shape
    ph, pw = patch_size
    coords = _denormalize(l, H, W)                               # (B, 2) int32
    from_ = coords - jnp.array([ph // 2, pw // 2], jnp.int32)    # top-left corner
    # PyTorch pads with zeros (by patch_size//2) only when the patch exceeds the
    # image; padding is a no-op for in-bounds patches, so always pad + shift.
    xp = jnp.pad(x, ((0, 0), (0, 0), (ph // 2, ph // 2), (pw // 2, pw // 2)))
    from_shift = from_ + jnp.array([ph // 2, pw // 2], jnp.int32)

    def slice_one(img, fr):
        return jax.lax.dynamic_slice(img, (0, fr[0], fr[1]), (C, ph, pw))

    return jax.vmap(slice_one)(xp, from_shift)                   # (B, C, ph, pw)


def foveate(x, l, g, k, s):
    """Foveated glimpse, flattened: (B, k * C * g0 * g1) float32."""
    B, C, H, W = x.shape
    g0, g1 = g
    phi = []
    size = (g0, g1)
    for _ in range(k):
        phi.append(_extract_patch(x, l, size))
        size = (s * size[0], s * size[1])
    for i in range(1, k):
        p = phi[i]
        ph, pw = p.shape[-2], p.shape[-1]
        h, w = ph // g0, pw // g1
        # exact avg_pool2d with kernel (h, w), stride (h, w)
        phi[i] = p.reshape(B, C, g0, h, g1, w).mean(axis=(3, 5))
    phi = jnp.stack(phi, axis=1)                                 # (B, k, C, g0, g1)
    return phi.reshape(B, -1)


# ----------------------------- Pallas kernel: both glimpse FC stacks, one shot -----------------------------

def _cnn_pair_kernel(phi_ref, loc_ref,
                     w1t_ref, b1_ref, w2t_ref, b2_ref,
                     w34t_ref, b34_ref,
                     out_ref):
    # Stacked inputs: leading axis 0 = network a, 1 = network b.  Both are
    # processed in a statically unrolled pair; the single store at the end is a
    # lane-dense (B, 2*h_out) write (no masked partial stores, no grid steps).
    outs = []
    for n in range(2):
        phi = phi_ref[n]                                   # (B, D_in)
        loc = loc_ref[n]                                   # (B, 2)

        # fc1 + ReLU (MXU, K = D_in = 128)
        h_phi = jnp.maximum(
            jnp.dot(phi, w1t_ref[n], preferred_element_type=jnp.float32)
            + b1_ref[n], 0.0)                              # (B, h_g)

        # fc2 + ReLU: K=2 matmul done on the VPU instead of wasting an MXU push.
        w2t = w2t_ref[n]                                   # (2, h_l)
        h_loc = jnp.maximum(
            loc[:, 0:1] * w2t[0:1, :] + loc[:, 1:2] * w2t[1:2, :] + b2_ref[n],
            0.0)                                           # (B, h_l)

        # fused fc3/fc4: [h_phi | h_loc] @ [W3T ; W4T] + (b3 + b4), then ReLU.
        h_cat = jnp.concatenate([h_phi, h_loc], axis=-1)   # (B, h_g + h_l)
        outs.append(jnp.maximum(
            jnp.dot(h_cat, w34t_ref[n], preferred_element_type=jnp.float32)
            + b34_ref[n], 0.0))                            # (B, h_out)

    # torch.cat((g_t_a, g_t_b), dim=1) emitted directly: one 128-lane-wide store.
    out_ref[...] = jnp.concatenate(outs, axis=-1)


# ----------------------------- parameter init (deterministic) -----------------------------

def init_glimpse_params(key, h_g, h_l, g, k, s, c):
    d_in = k * c * g[0] * g[1]
    keys = jax.random.split(key, 8)

    def lin(kw, kb, out_f, in_f):
        scale = 1.0 / jnp.sqrt(jnp.float32(in_f))
        W = jax.random.uniform(kw, (out_f, in_f), jnp.float32, -scale, scale)
        b = jax.random.uniform(kb, (out_f,), jnp.float32, -scale, scale)
        return W, b

    W1, b1 = lin(keys[0], keys[1], h_g, d_in)
    W2, b2 = lin(keys[2], keys[3], h_l, 2)
    W3, b3 = lin(keys[4], keys[5], h_g + h_l, h_g)
    W4, b4 = lin(keys[6], keys[7], h_g + h_l, h_l)
    return dict(W1=W1, b1=b1, W2=W2, b2=b2, W3=W3, b3=b3, W4=W4, b4=b4)


def pack_cnn_params(params_a, params_b):
    """One-time packing: pre-transpose, fuse W3/W4, and stack the two networks."""
    def stk(fn):
        return jnp.stack([fn(params_a), fn(params_b)], 0)

    return dict(
        W1T=stk(lambda p: p["W1"].T),                                   # (2, D_in, h_g)
        b1=stk(lambda p: p["b1"][None, :]),                             # (2, 1, h_g)
        W2T=stk(lambda p: p["W2"].T),                                   # (2, 2, h_l)
        b2=stk(lambda p: p["b2"][None, :]),                             # (2, 1, h_l)
        W34T=stk(lambda p: jnp.concatenate([p["W3"].T, p["W4"].T], 0)),  # (2, h_g+h_l, h_out)
        b34=stk(lambda p: (p["b3"] + p["b4"])[None, :]),                # (2, 1, h_out)
    )


# ----------------------------- cnn_network forward -----------------------------

def cnn_network_forward(packed, x_a, x_b, l_a, l_b, *, g, k, s):
    B = x_a.shape[0]
    phi = jnp.stack([foveate(x_a, l_a, g, k, s),
                     foveate(x_b, l_b, g, k, s)], 0)                    # (2, B, D_in)
    loc = jnp.stack([l_a, l_b], 0)                                      # (2, B, 2)
    h_out = packed["b34"].shape[-1]                                     # h_g + h_l

    args = (phi, loc,
            packed["W1T"], packed["b1"],
            packed["W2T"], packed["b2"],
            packed["W34T"], packed["b34"])

    # Everything is a few KB: full-array blocks resident in VMEM, no grid.
    vmem = lambda: pl.BlockSpec(memory_space=pltpu.MemorySpace.VMEM)
    return pl.pallas_call(
        _cnn_pair_kernel,
        out_shape=jax.ShapeDtypeStruct((B, 2 * h_out), jnp.float32),
        in_specs=[vmem() for _ in args],
        out_specs=vmem(),
    )(*args)


# ----------------------------- pure-JAX reference (for verification) -----------------------------

def _ref_glimpse(params, x, l, g, k, s):
    phi = foveate(x, l, g, k, s)
    h1 = jax.nn.relu(phi @ params["W1"].T + params["b1"])
    h2 = jax.nn.relu(l @ params["W2"].T + params["b2"])
    return jax.nn.relu(h1 @ params["W3"].T + params["b3"]
                       + h2 @ params["W4"].T + params["b4"])


def _ref_cnn(params_a, params_b, x_a, x_b, l_a, l_b, g, k, s):
    return jnp.concatenate([_ref_glimpse(params_a, x_a, l_a, g, k, s),
                            _ref_glimpse(params_b, x_b, l_b, g, k, s)], axis=1)


# ----------------------------- main -----------------------------

if __name__ == "__main__":
    # Module hyperparameters (small, consistent with the forward pass).
    h_g, h_l = 32, 32
    g, k, s, c = (8, 8), 2, 2, 1
    B, H, W = 2, 16, 16

    key = jax.random.PRNGKey(0)
    k_xa, k_xb, k_la, k_lb, k_pa, k_pb = jax.random.split(key, 6)

    x_a = jax.random.normal(k_xa, (B, c, H, W), jnp.float32)
    x_b = jax.random.normal(k_xb, (B, c, H, W), jnp.float32)
    l_a = jax.random.uniform(k_la, (B, 2), jnp.float32, -1.0, 1.0)
    l_b = jax.random.uniform(k_lb, (B, 2), jnp.float32, -1.0, 1.0)

    params_a = init_glimpse_params(k_pa, h_g, h_l, g, k, s, c)
    params_b = init_glimpse_params(k_pb, h_g, h_l, g, k, s, c)

    # One-time weight packing (hoisted out of the per-call forward path).
    packed = jax.tree_util.tree_map(jax.block_until_ready, pack_cnn_params(params_a, params_b))

    fwd = jax.jit(lambda p, xa, xb, la, lb:
                  cnn_network_forward(p, xa, xb, la, lb, g=g, k=k, s=s))

    g_t = jax.block_until_ready(fwd(packed, x_a, x_b, l_a, l_b))

    ref = _ref_cnn(params_a, params_b, x_a, x_b, l_a, l_b, g, k, s)
    assert g_t.shape == (B, 2 * (h_g + h_l)), g_t.shape
    assert jnp.allclose(g_t, ref, atol=1e-5, rtol=1e-5), "kernel/reference mismatch"

    print("KERNEL_OK")
</pallas_src>

<mosaic_0001>
module attributes {stable_mosaic.version = 11 : i64} {
  func.func @_cnn_pair_kernel(%arg0: memref<2x2x128xf32, #tpu.memory_space<vmem>>, %arg1: memref<2x2x2xf32, #tpu.memory_space<vmem>>, %arg2: memref<2x128x32xf32, #tpu.memory_space<vmem>>, %arg3: memref<2x1x32xf32, #tpu.memory_space<vmem>>, %arg4: memref<2x2x32xf32, #tpu.memory_space<vmem>>, %arg5: memref<2x1x32xf32, #tpu.memory_space<vmem>>, %arg6: memref<2x64x64xf32, #tpu.memory_space<vmem>>, %arg7: memref<2x1x64xf32, #tpu.memory_space<vmem>>, %arg8: memref<2x128xf32, #tpu.memory_space<vmem>>) attributes {dimension_semantics = [], scalar_prefetch = 0 : i64, scratch_operands = 0 : i64, tpu.core_type = #tpu.core_type<tc>} {
    %c0 = arith.constant 0 : index
    %c0_0 = arith.constant 0 : index
    %c0_1 = arith.constant 0 : index
    %0 = vector.load %arg0[%c0, %c0_0, %c0_1] : memref<2x2x128xf32, #tpu.memory_space<vmem>>, vector<1x2x128xf32>
    %1 = vector.shape_cast %0 : vector<1x2x128xf32> to vector<2x128xf32>
    %c0_2 = arith.constant 0 : index
    %c0_3 = arith.constant 0 : index
    %c0_4 = arith.constant 0 : index
    %2 = vector.load %arg1[%c0_2, %c0_3, %c0_4] : memref<2x2x2xf32, #tpu.memory_space<vmem>>, vector<1x2x2xf32>
    %3 = vector.shape_cast %2 : vector<1x2x2xf32> to vector<2x2xf32>
    %c0_5 = arith.constant 0 : index
    %c0_6 = arith.constant 0 : index
    %c0_7 = arith.constant 0 : index
    %4 = vector.load %arg2[%c0_5, %c0_6, %c0_7] : memref<2x128x32xf32, #tpu.memory_space<vmem>>, vector<1x128x32xf32>
    %5 = vector.shape_cast %4 : vector<1x128x32xf32> to vector<128x32xf32>
    %cst = arith.constant dense<0.000000e+00> : vector<2x32xf32>
    %6 = tpu.matmul %1, %5, %cst {dimension_numbers = #tpu.dot_dimension_numbers<[1], [0], [0], [1], [0, 0, 1, 1], [], []>} : vector<2x128xf32>, vector<128x32xf32>, vector<2x32xf32> -> vector<2x32xf32>
    %c0_8 = arith.constant 0 : index
    %c0_9 = arith.constant 0 : index
    %c0_10 = arith.constant 0 : index
    %7 = vector.load %arg3[%c0_8, %c0_9, %c0_10] : memref<2x1x32xf32, #tpu.memory_space<vmem>>, vector<1x1x32xf32>
    %8 = vector.shape_cast %7 : vector<1x1x32xf32> to vector<1x32xf32>
    %9 = vector.broadcast %8 : vector<1x32xf32> to vector<2x32xf32>
    %10 = arith.addf %6, %9 : vector<2x32xf32>
    %cst_11 = arith.constant 0.000000e+00 : f32
    %11 = vector.broadcast %cst_11 : f32 to vector<2x32xf32>
    %12 = arith.maximumf %10, %11 : vector<2x32xf32>
    %c0_12 = arith.constant 0 : index
    %c0_13 = arith.constant 0 : index
    %c0_14 = arith.constant 0 : index
    %13 = vector.load %arg4[%c0_12, %c0_13, %c0_14] : memref<2x2x32xf32, #tpu.memory_space<vmem>>, vector<1x2x32xf32>
    %14 = vector.shape_cast %13 : vector<1x2x32xf32> to vector<2x32xf32>
    %15 = vector.extract_strided_slice %3 {offsets = [0, 0], sizes = [2, 1], strides = [1, 1]} : vector<2x2xf32> to vector<2x1xf32>
    %16 = vector.extract_strided_slice %14 {offsets = [0, 0], sizes = [1, 32], strides = [1, 1]} : vector<2x32xf32> to vector<1x32xf32>
    %17 = vector.broadcast %15 : vector<2x1xf32> to vector<2x32xf32>
    %18 = vector.broadcast %16 : vector<1x32xf32> to vector<2x32xf32>
    %19 = arith.mulf %17, %18 : vector<2x32xf32>
    %20 = vector.extract_strided_slice %3 {offsets = [0, 1], sizes = [2, 1], strides = [1, 1]} : vector<2x2xf32> to vector<2x1xf32>
    %21 = vector.extract_strided_slice %14 {offsets = [1, 0], sizes = [1, 32], strides = [1, 1]} : vector<2x32xf32> to vector<1x32xf32>
    %22 = vector.broadcast %20 : vector<2x1xf32> to vector<2x32xf32>
    %23 = vector.broadcast %21 : vector<1x32xf32> to vector<2x32xf32>
    %24 = arith.mulf %22, %23 : vector<2x32xf32>
    %25 = arith.addf %19, %24 : vector<2x32xf32>
    %c0_15 = arith.constant 0 : index
    %c0_16 = arith.constant 0 : index
    %c0_17 = arith.constant 0 : index
    %26 = vector.load %arg5[%c0_15, %c0_16, %c0_17] : memref<2x1x32xf32, #tpu.memory_space<vmem>>, vector<1x1x32xf32>
    %27 = vector.shape_cast %26 : vector<1x1x32xf32> to vector<1x32xf32>
    %28 = vector.broadcast %27 : vector<1x32xf32> to vector<2x32xf32>
    %29 = arith.addf %25, %28 : vector<2x32xf32>
    %cst_18 = arith.constant 0.000000e+00 : f32
    %30 = vector.broadcast %cst_18 : f32 to vector<2x32xf32>
    %31 = arith.maximumf %29, %30 : vector<2x32xf32>
    %32 = tpu.concatenate %12, %31 in 1 : vector<2x32xf32>, vector<2x32xf32> -> vector<2x64xf32>
    %c0_19 = arith.constant 0 : index
    %c0_20 = arith.constant 0 : index
    %c0_21 = arith.constant 0 : index
    %33 = vector.load %arg6[%c0_19, %c0_20, %c0_21] : memref<2x64x64xf32, #tpu.memory_space<vmem>>, vector<1x64x64xf32>
    %34 = vector.shape_cast %33 : vector<1x64x64xf32> to vector<64x64xf32>
    %cst_22 = arith.constant dense<0.000000e+00> : vector<2x64xf32>
    %35 = tpu.matmul %32, %34, %cst_22 {dimension_numbers = #tpu.dot_dimension_numbers<[1], [0], [0], [1], [0, 0, 1, 1], [], []>} : vector<2x64xf32>, vector<64x64xf32>, vector<2x64xf32> -> vector<2x64xf32>
    %c0_23 = arith.constant 0 : index
    %c0_24 = arith.constant 0 : index
    %c0_25 = arith.constant 0 : index
    %36 = vector.load %arg7[%c0_23, %c0_24, %c0_25] : memref<2x1x64xf32, #tpu.memory_space<vmem>>, vector<1x1x64xf32>
    %37 = vector.shape_cast %36 : vector<1x1x64xf32> to vector<1x64xf32>
    %38 = vector.broadcast %37 : vector<1x64xf32> to vector<2x64xf32>
    %39 = arith.addf %35, %38 : vector<2x64xf32>
    %cst_26 = arith.constant 0.000000e+00 : f32
    %40 = vector.broadcast %cst_26 : f32 to vector<2x64xf32>
    %41 = arith.maximumf %39, %40 : vector<2x64xf32>
    %c1 = arith.constant 1 : index
    %c0_27 = arith.constant 0 : index
    %c0_28 = arith.constant 0 : index
    %42 = vector.load %arg0[%c1, %c0_27, %c0_28] : memref<2x2x128xf32, #tpu.memory_space<vmem>>, vector<1x2x128xf32>
    %43 = vector.shape_cast %42 : vector<1x2x128xf32> to vector<2x128xf32>
    %c1_29 = arith.constant 1 : index
    %c0_30 = arith.constant 0 : index
    %c0_31 = arith.constant 0 : index
    %44 = vector.load %arg1[%c1_29, %c0_30, %c0_31] : memref<2x2x2xf32, #tpu.memory_space<vmem>>, vector<1x2x2xf32>
    %45 = vector.shape_cast %44 : vector<1x2x2xf32> to vector<2x2xf32>
    %c1_32 = arith.constant 1 : index
    %c0_33 = arith.constant 0 : index
    %c0_34 = arith.constant 0 : index
    %46 = vector.load %arg2[%c1_32, %c0_33, %c0_34] : memref<2x128x32xf32, #tpu.memory_space<vmem>>, vector<1x128x32xf32>
    %47 = vector.shape_cast %46 : vector<1x128x32xf32> to vector<128x32xf32>
    %cst_35 = arith.constant dense<0.000000e+00> : vector<2x32xf32>
    %48 = tpu.matmul %43, %47, %cst_35 {dimension_numbers = #tpu.dot_dimension_numbers<[1], [0], [0], [1], [0, 0, 1, 1], [], []>} : vector<2x128xf32>, vector<128x32xf32>, vector<2x32xf32> -> vector<2x32xf32>
    %c1_36 = arith.constant 1 : index
    %c0_37 = arith.constant 0 : index
    %c0_38 = arith.constant 0 : index
    %49 = vector.load %arg3[%c1_36, %c0_37, %c0_38] : memref<2x1x32xf32, #tpu.memory_space<vmem>>, vector<1x1x32xf32>
    %50 = vector.shape_cast %49 : vector<1x1x32xf32> to vector<1x32xf32>
    %51 = vector.broadcast %50 : vector<1x32xf32> to vector<2x32xf32>
    %52 = arith.addf %48, %51 : vector<2x32xf32>
    %cst_39 = arith.constant 0.000000e+00 : f32
    %53 = vector.broadcast %cst_39 : f32 to vector<2x32xf32>
    %54 = arith.maximumf %52, %53 : vector<2x32xf32>
    %c1_40 = arith.constant 1 : index
    %c0_41 = arith.constant 0 : index
    %c0_42 = arith.constant 0 : index
    %55 = vector.load %arg4[%c1_40, %c0_41, %c0_42] : memref<2x2x32xf32, #tpu.memory_space<vmem>>, vector<1x2x32xf32>
    %56 = vector.shape_cast %55 : vector<1x2x32xf32> to vector<2x32xf32>
    %57 = vector.extract_strided_slice %45 {offsets = [0, 0], sizes = [2, 1], strides = [1, 1]} : vector<2x2xf32> to vector<2x1xf32>
    %58 = vector.extract_strided_slice %56 {offsets = [0, 0], sizes = [1, 32], strides = [1, 1]} : vector<2x32xf32> to vector<1x32xf32>
    %59 = vector.broadcast %57 : vector<2x1xf32> to vector<2x32xf32>
    %60 = vector.broadcast %58 : vector<1x32xf32> to vector<2x32xf32>
    %61 = arith.mulf %59, %60 : vector<2x32xf32>
    %62 = vector.extract_strided_slice %45 {offsets = [0, 1], sizes = [2, 1], strides = [1, 1]} : vector<2x2xf32> to vector<2x1xf32>
    %63 = vector.extract_strided_slice %56 {offsets = [1, 0], sizes = [1, 32], strides = [1, 1]} : vector<2x32xf32> to vector<1x32xf32>
    %64 = vector.broadcast %62 : vector<2x1xf32> to vector<2x32xf32>
    %65 = vector.broadcast %63 : vector<1x32xf32> to vector<2x32xf32>
    %66 = arith.mulf %64, %65 : vector<2x32xf32>
    %67 = arith.addf %61, %66 : vector<2x32xf32>
    %c1_43 = arith.constant 1 : index
    %c0_44 = arith.constant 0 : index
    %c0_45 = arith.constant 0 : index
    %68 = vector.load %arg5[%c1_43, %c0_44, %c0_45] : memref<2x1x32xf32, #tpu.memory_space<vmem>>, vector<1x1x32xf32>
    %69 = vector.shape_cast %68 : vector<1x1x32xf32> to vector<1x32xf32>
    %70 = vector.broadcast %69 : vector<1x32xf32> to vector<2x32xf32>
    %71 = arith.addf %67, %70 : vector<2x32xf32>
    %cst_46 = arith.constant 0.000000e+00 : f32
    %72 = vector.broadcast %cst_46 : f32 to vector<2x32xf32>
    %73 = arith.maximumf %71, %72 : vector<2x32xf32>
    %74 = tpu.concatenate %54, %73 in 1 : vector<2x32xf32>, vector<2x32xf32> -> vector<2x64xf32>
    %c1_47 = arith.constant 1 : index
    %c0_48 = arith.constant 0 : index
    %c0_49 = arith.constant 0 : index
    %75 = vector.load %arg6[%c1_47, %c0_48, %c0_49] : memref<2x64x64xf32, #tpu.memory_space<vmem>>, vector<1x64x64xf32>
    %76 = vector.shape_cast %75 : vector<1x64x64xf32> to vector<64x64xf32>
    %cst_50 = arith.constant dense<0.000000e+00> : vector<2x64xf32>
    %77 = tpu.matmul %74, %76, %cst_50 {dimension_numbers = #tpu.dot_dimension_numbers<[1], [0], [0], [1], [0, 0, 1, 1], [], []>} : vector<2x64xf32>, vector<64x64xf32>, vector<2x64xf32> -> vector<2x64xf32>
    %c1_51 = arith.constant 1 : index
    %c0_52 = arith.constant 0 : index
    %c0_53 = arith.constant 0 : index
    %78 = vector.load %arg7[%c1_51, %c0_52, %c0_53] : memref<2x1x64xf32, #tpu.memory_space<vmem>>, vector<1x1x64xf32>
    %79 = vector.shape_cast %78 : vector<1x1x64xf32> to vector<1x64xf32>
    %80 = vector.broadcast %79 : vector<1x64xf32> to vector<2x64xf32>
    %81 = arith.addf %77, %80 : vector<2x64xf32>
    %cst_54 = arith.constant 0.000000e+00 : f32
    %82 = vector.broadcast %cst_54 : f32 to vector<2x64xf32>
    %83 = arith.maximumf %81, %82 : vector<2x64xf32>
    %84 = tpu.concatenate %41, %83 in 1 : vector<2x64xf32>, vector<2x64xf32> -> vector<2x128xf32>
    %c0_55 = arith.constant 0 : index
    %c0_56 = arith.constant 0 : index
    %85 = vector.load %arg8[%c0_55, %c0_56] : memref<2x128xf32, #tpu.memory_space<vmem>>, vector<2x128xf32>
    tpu.vector_store %arg8[%c0_55, %c0_56], %84 {strides = array<i32>} : memref<2x128xf32, #tpu.memory_space<vmem>>, vector<2x128xf32>,
    return
  }
}

</mosaic_0001>

<llo_original>
// kernel: _lambda_.1
$region0: #{_lambda_.1}
  #allocation0 [shape = 'u32[]', space=smem, size = 0x4, offset = 0x4, fixed_abs, tag = 'smem constant byte address 0x4 - core index']
  #allocation1 [shape = 'u32[144,128]{1,0:T(1,128)}', space=vmem, size = 0x12000, scoped, tag = 'internal scratch']
  %s0 = inlined_call_operand.vmem [shape: f32[2,2,128], index: 0, kind: input, shape index: {}]
  %s1 = inlined_call_operand.vmem [shape: f32[2,2,2], index: 1, kind: input, shape index: {}]
  %s2 = inlined_call_operand.vmem [shape: f32[2,128,32], index: 2, kind: input, shape index: {}]
  %s3 = inlined_call_operand.vmem [shape: f32[2,1,32], index: 3, kind: input, shape index: {}]
  %s4 = inlined_call_operand.vmem [shape: f32[2,2,32], index: 4, kind: input, shape index: {}]
  %s5 = inlined_call_operand.vmem [shape: f32[2,1,32], index: 5, kind: input, shape index: {}]
  %s6 = inlined_call_operand.vmem [shape: f32[2,64,64], index: 6, kind: input, shape index: {}]
  %s7 = inlined_call_operand.vmem [shape: f32[2,1,64], index: 7, kind: input, shape index: {}]
  %s8 = inlined_call_operand.hbm [shape: f32[2,128], index: 8, kind: output, shape index: {}]
  %s9 = sld [smem:[#allocation0]]
  $region42: #{_lambda_.1} parent=0
    _
  %s11 = ssub.s32 1, %s9
  %s12 = scalar_select 0, %s11, %s9
  $region1: #{_lambda_.1} parent=0
    #allocation2 [shape = 'u8[1024]{0}', space=vmem, size = 0x400, scoped, tag = 'output window, operand 0, single buffered']
    #allocation3 [shape = 's32[1]{0}', space=sflag, size = 0x4, scoped, tag = 'scoped memory for _lambda_.1']
    %13 = vsyncpa [#allocation3], 0
    // Predicated region
    $region2: #{_lambda_.1} parent=1 // pred_check
      _
    $region3: #{_lambda_.1} parent=1 // pred_check_branch
      %15 = sbr.rel (0) target = $region5
    $region4: #{_lambda_.1} parent=1 // pred_region
      _
    $region5: #{_lambda_.1} parent=1 // pred_fallthru
      _
    // Predicated region
    $region6: #{_lambda_.1} parent=1 // pred_check
      _
    $region7: #{_lambda_.1} parent=1 // pred_check_branch
      %17 = sbr.rel (0) target = $region9
    $region8: #{_lambda_.1} parent=1 // pred_region
      _
    $region9: #{_lambda_.1} parent=1 // pred_fallthru
      _
    // Predicated region
    $region10: #{_lambda_.1} parent=1 // pred_check
      _
    $region11: #{_lambda_.1} parent=1 // pred_check_branch
      %19 = sbr.rel (0) target = $region13
    $region12: #{_lambda_.1} parent=1 // pred_region
      _
    $region13: #{_lambda_.1} parent=1 // pred_fallthru
      _
    // Predicated region
    $region14: #{_lambda_.1} parent=1 // pred_check
      _
    $region15: #{_lambda_.1} parent=1 // pred_check_branch
      %21 = sbr.rel (0) target = $region17
    $region16: #{_lambda_.1} parent=1 // pred_region
      _
    $region17: #{_lambda_.1} parent=1 // pred_fallthru
      _
    // Predicated region
    $region18: #{_lambda_.1} parent=1 // pred_check
      _
    $region19: #{_lambda_.1} parent=1 // pred_check_branch
      %23 = sbr.rel (0) target = $region21
    $region20: #{_lambda_.1} parent=1 // pred_region
      _
    $region21: #{_lambda_.1} parent=1 // pred_fallthru
      _
    // Predicated region
    $region22: #{_lambda_.1} parent=1 // pred_check
      _
    $region23: #{_lambda_.1} parent=1 // pred_check_branch
      %25 = sbr.rel (0) target = $region25
    $region24: #{_lambda_.1} parent=1 // pred_region
      _
    $region25: #{_lambda_.1} parent=1 // pred_fallthru
      _
    // Predicated region
    $region26: #{_lambda_.1} parent=1 // pred_check
      _
    $region27: #{_lambda_.1} parent=1 // pred_check_branch
      %27 = sbr.rel (0) target = $region29
    $region28: #{_lambda_.1} parent=1 // pred_region
      _
    $region29: #{_lambda_.1} parent=1 // pred_fallthru
      _
    // Predicated region
    $region30: #{_lambda_.1} parent=1 // pred_check
      _
    $region31: #{_lambda_.1} parent=1 // pred_check_branch
      %29 = sbr.rel (0) target = $region33
    $region32: #{_lambda_.1} parent=1 // pred_region
      _
    $region33: #{_lambda_.1} parent=1 // pred_fallthru
      _
    %v30 = vld [vmem:[%s0] sm:$0x3]
    %v31 = vld [vmem:[%s1] sm:$0x3]
    %v32 = vld [vmem:[%s2] sm:$0xff]
    %v33 = vld [vmem:[%s2 + $0x8] sm:$0xff]
    %v34 = vld [vmem:[%s2 + $0x10] sm:$0xff]
    %v35 = vld [vmem:[%s2 + $0x18] sm:$0xff]
    %v36 = vld [vmem:[%s2 + $0x20] sm:$0xff]
    %v37 = vld [vmem:[%s2 + $0x28] sm:$0xff]
    %v38 = vld [vmem:[%s2 + $0x30] sm:$0xff]
    %v39 = vld [vmem:[%s2 + $0x38] sm:$0xff]
    %v40 = vld [vmem:[%s2 + $0x40] sm:$0xff]
    %v41 = vld [vmem:[%s2 + $0x48] sm:$0xff]
    %v42 = vld [vmem:[%s2 + $0x50] sm:$0xff]
    %v43 = vld [vmem:[%s2 + $0x58] sm:$0xff]
    %v44 = vld [vmem:[%s2 + $0x60] sm:$0xff]
    %v45 = vld [vmem:[%s2 + $0x68] sm:$0xff]
    %v46 = vld [vmem:[%s2 + $0x70] sm:$0xff]
    %v47 = vld [vmem:[%s2 + $0x78] sm:$0xff]
    %v48 = vld [vmem:[%s3] sm:$0x1]
    %v50 = vlaneseq
    %v51 = vshrl.u32 %v50, 7
    %v52 = vsub.s32 0, %v51
    %v53 = vrot.slane %v48, %v52
    %55 = vmatprep.subr.mxu0 0.0
    %56 = vmatpush1.msra.mxu0 %v32
    %57 = vmatprep.subr.mxu0 0.0
    %58 = vmatpush1.msra.mxu0 %v33
    %59 = vmatprep.subr.mxu0 0.0
    %60 = vmatpush1.msra.mxu0 %v34
    %61 = vmatprep.subr.mxu0 0.0
    %62 = vmatpush1.msra.mxu0 %v35
    %63 = vmatprep.subr.mxu0 0.0
    %64 = vmatpush1.msra.mxu0 %v36
    %65 = vmatprep.subr.mxu0 0.0
    %66 = vmatpush1.msra.mxu0 %v37
    %67 = vmatprep.subr.mxu0 0.0
    %68 = vmatpush1.msra.mxu0 %v38
    %69 = vmatprep.subr.mxu0 0.0
    %70 = vmatpush1.msra.mxu0 %v39
    %71 = vmatprep.subr.mxu0 0.0
    %72 = vmatpush1.msra.mxu0 %v40
    %73 = vmatprep.subr.mxu0 0.0
    %74 = vmatpush1.msra.mxu0 %v41
    %75 = vmatprep.subr.mxu0 0.0
    %76 = vmatpush1.msra.mxu0 %v42
    %77 = vmatprep.subr.mxu0 0.0
    %78 = vmatpush1.msra.mxu0 %v43
    %79 = vmatprep.subr.mxu0 0.0
    %80 = vmatpush1.msra.mxu0 %v44
    %81 = vmatprep.subr.mxu0 0.0
    %82 = vmatpush1.msra.mxu0 %v45
    %83 = vmatprep.subr.mxu0 0.0
    %84 = vmatpush1.msra.mxu0 %v46
    %85 = vmatprep.subr.mxu0 0.0
    %86 = vmatpush1.msra.mxu0 %v47
    %87 = vmatprep.subr.mxu0 0.0
    %88 = vmatpush1.msra.mxu0 0.0
    %89 = vmatprep.subr.mxu0 0.0
    %90 = vmatpush1.msra.mxu0 0.0
    %91 = vmatprep.subr.mxu0 0.0
    %92 = vmatpush1.msra.mxu0 0.0
    %93 = vmatprep.subr.mxu0 0.0
    %94 = vmatpush1.msra.mxu0 0.0
    %95 = vmatprep.subr.mxu0 0.0
    %96 = vmatpush1.msra.mxu0 0.0
    %97 = vmatprep.subr.mxu0 0.0
    %98 = vmatpush1.msra.mxu0 0.0
    %99 = vmatprep.subr.mxu0 0.0
    %100 = vmatpush1.msra.mxu0 0.0
    %101 = vmatprep.subr.mxu0 0.0
    %102 = vmatpush1.msra.mxu0 0.0
    %103 = vmatprep.subr.mxu0 0.0
    %104 = vmatpush1.msra.mxu0 0.0
    %105 = vmatprep.subr.mxu0 0.0
    %106 = vmatpush1.msra.mxu0 0.0
    %107 = vmatprep.subr.mxu0 0.0
    %108 = vmatpush1.msra.mxu0 0.0
    %109 = vmatprep.subr.mxu0 0.0
    %110 = vmatpush1.msra.mxu0 0.0
    %111 = vmatprep.subr.mxu0 0.0
    %112 = vmatpush1.msra.mxu0 0.0
    %113 = vmatprep.subr.mxu0 0.0
    %114 = vmatpush1.msra.mxu0 0.0
    %115 = vmatprep.subr.mxu0 0.0
    %116 = vmatpush1.msra.mxu0 0.0
    %117 = vmatprep.subr.mxu0 0.0
    %118 = vmatpush1.msra.mxu0 0.0
    %119 = vmatprep.mubr.f32.mxu0 0.0
    %120 = vmatmul.mubr.f32.gmra.mrb[0].mxu0 %v30
    %v121 = vpop.f32.mrb[0].mxu0
    %v122 = vadd.f32 %v53, %v121
    %v123 = vpop.f32.mrb[0].mxu0
    %124 = vdwg.mxu0
    %v125 = vmax.f32 %v122, 0.0
    %v126 = vld [vmem:[%s4] sm:$0x3]
    %128 = vset.pattern.permute.xlu0 0
    %129 = vperm.xlu0 %128, %v31
    %v130 = vpop.permute.xlu0 %129
    %v132 = vlaneseq
    %v133 = vshrl.u32 %v132, 7
    %v134 = vsub.s32 0, %v133
    %v135 = vrot.slane %v126, %v134
    %v136 = vmul.f32 %v130, %v135
    %137 = vset.pattern.permute.xlu0 1
    %138 = vperm.xlu0 %137, %v31
    %v139 = vpop.permute.xlu0 %138
    %v141 = vlaneseq
    %v142 = vshrl.u32 %v141, 7
    %v143 = vsub.s32 1, %v142
    %v144 = vrot.slane %v126, %v143
    %v145 = vmul.f32 %v139, %v144
    %v146 = vadd.f32 %v136, %v145
    %v147 = vld [vmem:[%s5] sm:$0x1]
    %v149 = vlaneseq
    %v150 = vshrl.u32 %v149, 7
    %v151 = vsub.s32 0, %v150
    %v152 = vrot.slane %v147, %v151
    %v154 = vadd.f32 %v146, %v152
    %v155 = vmax.f32 %v154, 0.0
    %157 = vrot.lane.b32.xlu0 %v155, 32
    %v158 = vpop.permute.xlu0 %157
    %vm160 = vcmask 261120
    %v161 = vsel %vm160, %v125, %v158
    %v162 = vld [vmem:[%s6] sm:$0xff]
    %v163 = vld [vmem:[%s6 + $0x8] sm:$0xff]
    %v164 = vld [vmem:[%s6 + $0x10] sm:$0xff]
    %v165 = vld [vmem:[%s6 + $0x18] sm:$0xff]
    %v166 = vld [vmem:[%s6 + $0x20] sm:$0xff]
    %v167 = vld [vmem:[%s6 + $0x28] sm:$0xff]
    %v168 = vld [vmem:[%s6 + $0x30] sm:$0xff]
    %v169 = vld [vmem:[%s6 + $0x38] sm:$0xff]
    %v170 = vld [vmem:[%s7] sm:$0x1]
    %v172 = vlaneseq
    %v173 = vshrl.u32 %v172, 7
    %v174 = vsub.s32 0, %v173
    %v175 = vrot.slane %v170, %v174
    %vm177 = vcmask 523264
    %v179 = vsel %vm177, %v161, 0
    %181 = vmatprep.subr.mxu0 0.0
    %182 = vmatpush1.msra.mxu0 %v162
    %183 = vmatprep.subr.mxu0 0.0
    %184 = vmatpush1.msra.mxu0 %v163
    %185 = vmatprep.subr.mxu0 0.0
    %186 = vmatpush1.msra.mxu0 %v164
    %187 = vmatprep.subr.mxu0 0.0
    %188 = vmatpush1.msra.mxu0 %v165
    %189 = vmatprep.subr.mxu0 0.0
    %190 = vmatpush1.msra.mxu0 %v166
    %191 = vmatprep.subr.mxu0 0.0
    %192 = vmatpush1.msra.mxu0 %v167
    %193 = vmatprep.subr.mxu0 0.0
    %194 = vmatpush1.msra.mxu0 %v168
    %195 = vmatprep.subr.mxu0 0.0
    %196 = vmatpush1.msra.mxu0 %v169
    %197 = vmatprep.subr.mxu0 0.0
    %198 = vmatpush1.msra.mxu0 0.0
    %199 = vmatprep.subr.mxu0 0.0
    %200 = vmatpush1.msra.mxu0 0.0
    %201 = vmatprep.subr.mxu0 0.0
    %202 = vmatpush1.msra.mxu0 0.0
    %203 = vmatprep.subr.mxu0 0.0
    %204 = vmatpush1.msra.mxu0 0.0
    %205 = vmatprep.subr.mxu0 0.0
    %206 = vmatpush1.msra.mxu0 0.0
    %207 = vmatprep.subr.mxu0 0.0
    %208 = vmatpush1.msra.mxu0 0.0
    %209 = vmatprep.subr.mxu0 0.0
    %210 = vmatpush1.msra.mxu0 0.0
    %211 = vmatprep.subr.mxu0 0.0
    %212 = vmatpush1.msra.mxu0 0.0
    %213 = vmatprep.subr.mxu0 0.0
    %214 = vmatpush1.msra.mxu0 0.0
    %215 = vmatprep.subr.mxu0 0.0
    %216 = vmatpush1.msra.mxu0 0.0
    %217 = vmatprep.subr.mxu0 0.0
    %218 = vmatpush1.msra.mxu0 0.0
    %219 = vmatprep.subr.mxu0 0.0
    %220 = vmatpush1.msra.mxu0 0.0
    %221 = vmatprep.subr.mxu0 0.0
    %222 = vmatpush1.msra.mxu0 0.0
    %223 = vmatprep.subr.mxu0 0.0
    %224 = vmatpush1.msra.mxu0 0.0
    %225 = vmatprep.subr.mxu0 0.0
    %226 = vmatpush1.msra.mxu0 0.0
    %227 = vmatprep.subr.mxu0 0.0
    %228 = vmatpush1.msra.mxu0 0.0
    %229 = vmatprep.subr.mxu0 0.0
    %230 = vmatpush1.msra.mxu0 0.0
    %231 = vmatprep.subr.mxu0 0.0
    %232 = vmatpush1.msra.mxu0 0.0
    %233 = vmatprep.subr.mxu0 0.0
    %234 = vmatpush1.msra.mxu0 0.0
    %235 = vmatprep.subr.mxu0 0.0
    %236 = vmatpush1.msra.mxu0 0.0
    %237 = vmatprep.subr.mxu0 0.0
    %238 = vmatpush1.msra.mxu0 0.0
    %239 = vmatprep.subr.mxu0 0.0
    %240 = vmatpush1.msra.mxu0 0.0
    %241 = vmatprep.subr.mxu0 0.0
    %242 = vmatpush1.msra.mxu0 0.0
    %243 = vmatprep.subr.mxu0 0.0
    %244 = vmatpush1.msra.mxu0 0.0
    %245 = vmatprep.mubr.f32.mxu0 0.0
    %246 = vmatmul.mubr.f32.gmra.mrb[0].mxu0 %v179
    %v247 = vpop.f32.mrb[0].mxu0
    %v248 = vadd.f32 %v175, %v247
    %v249 = vpop.f32.mrb[0].mxu0
    %250 = vdwg.mxu0
    %v251 = vmax.f32 %v248, 0.0
    %s252 = scalar_lea.vmem %s0, 2
    %v253 = vld [vmem:[%s252] sm:$0x3]
    %s254 = scalar_lea.vmem %s1, 2
    %v255 = vld [vmem:[%s254] sm:$0x3]
    %s256 = scalar_lea.vmem %s2, 128
    %v257 = vld [vmem:[%s256] sm:$0xff]
    %v258 = vld [vmem:[%s256 + $0x8] sm:$0xff]
    %v259 = vld [vmem:[%s256 + $0x10] sm:$0xff]
    %v260 = vld [vmem:[%s256 + $0x18] sm:$0xff]
    %v261 = vld [vmem:[%s256 + $0x20] sm:$0xff]
    %v262 = vld [vmem:[%s256 + $0x28] sm:$0xff]
    %v263 = vld [vmem:[%s256 + $0x30] sm:$0xff]
    %v264 = vld [vmem:[%s256 + $0x38] sm:$0xff]
    %v265 = vld [vmem:[%s256 + $0x40] sm:$0xff]
    %v266 = vld [vmem:[%s256 + $0x48] sm:$0xff]
    %v267 = vld [vmem:[%s256 + $0x50] sm:$0xff]
    %v268 = vld [vmem:[%s256 + $0x58] sm:$0xff]
    %v269 = vld [vmem:[%s256 + $0x60] sm:$0xff]
    %v270 = vld [vmem:[%s256 + $0x68] sm:$0xff]
    %v271 = vld [vmem:[%s256 + $0x70] sm:$0xff]
    %v272 = vld [vmem:[%s256 + $0x78] sm:$0xff]
    %s273 = scalar_lea.vmem %s3, 1
    %v274 = vld [vmem:[%s273] sm:$0x1]
    %v276 = vlaneseq
    %v277 = vshrl.u32 %v276, 7
    %v278 = vsub.s32 0, %v277
    %v279 = vrot.slane %v274, %v278
    %281 = vmatprep.subr.mxu0 0.0
    %282 = vmatpush1.msra.mxu0 %v257
    %283 = vmatprep.subr.mxu0 0.0
    %284 = vmatpush1.msra.mxu0 %v258
    %285 = vmatprep.subr.mxu0 0.0
    %286 = vmatpush1.msra.mxu0 %v259
    %287 = vmatprep.subr.mxu0 0.0
    %288 = vmatpush1.msra.mxu0 %v260
    %289 = vmatprep.subr.mxu0 0.0
    %290 = vmatpush1.msra.mxu0 %v261
    %291 = vmatprep.subr.mxu0 0.0
    %292 = vmatpush1.msra.mxu0 %v262
    %293 = vmatprep.subr.mxu0 0.0
    %294 = vmatpush1.msra.mxu0 %v263
    %295 = vmatprep.subr.mxu0 0.0
    %296 = vmatpush1.msra.mxu0 %v264
    %297 = vmatprep.subr.mxu0 0.0
    %298 = vmatpush1.msra.mxu0 %v265
    %299 = vmatprep.subr.mxu0 0.0
    %300 = vmatpush1.msra.mxu0 %v266
    %301 = vmatprep.subr.mxu0 0.0
    %302 = vmatpush1.msra.mxu0 %v267
    %303 = vmatprep.subr.mxu0 0.0
    %304 = vmatpush1.msra.mxu0 %v268
    %305 = vmatprep.subr.mxu0 0.0
    %306 = vmatpush1.msra.mxu0 %v269
    %307 = vmatprep.subr.mxu0 0.0
    %308 = vmatpush1.msra.mxu0 %v270
    %309 = vmatprep.subr.mxu0 0.0
    %310 = vmatpush1.msra.mxu0 %v271
    %311 = vmatprep.subr.mxu0 0.0
    %312 = vmatpush1.msra.mxu0 %v272
    %313 = vmatprep.subr.mxu0 0.0
    %314 = vmatpush1.msra.mxu0 0.0
    %315 = vmatprep.subr.mxu0 0.0
    %316 = vmatpush1.msra.mxu0 0.0
    %317 = vmatprep.subr.mxu0 0.0
    %318 = vmatpush1.msra.mxu0 0.0
    %319 = vmatprep.subr.mxu0 0.0
    %320 = vmatpush1.msra.mxu0 0.0
    %321 = vmatprep.subr.mxu0 0.0
    %322 = vmatpush1.msra.mxu0 0.0
    %323 = vmatprep.subr.mxu0 0.0
    %324 = vmatpush1.msra.mxu0 0.0
    %325 = vmatprep.subr.mxu0 0.0
    %326 = vmatpush1.msra.mxu0 0.0
    %327 = vmatprep.subr.mxu0 0.0
    %328 = vmatpush1.msra.mxu0 0.0
    %329 = vmatprep.subr.mxu0 0.0
    %330 = vmatpush1.msra.mxu0 0.0
    %331 = vmatprep.subr.mxu0 0.0
    %332 = vmatpush1.msra.mxu0 0.0
    %333 = vmatprep.subr.mxu0 0.0
    %334 = vmatpush1.msra.mxu0 0.0
    %335 = vmatprep.subr.mxu0 0.0
    %336 = vmatpush1.msra.mxu0 0.0
    %337 = vmatprep.subr.mxu0 0.0
    %338 = vmatpush1.msra.mxu0 0.0
    %339 = vmatprep.subr.mxu0 0.0
    %340 = vmatpush1.msra.mxu0 0.0
    %341 = vmatprep.subr.mxu0 0.0
    %342 = vmatpush1.msra.mxu0 0.0
    %343 = vmatprep.subr.mxu0 0.0
    %344 = vmatpush1.msra.mxu0 0.0
    %345 = vmatprep.mubr.f32.mxu0 0.0
    %346 = vmatmul.mubr.f32.gmra.mrb[0].mxu0 %v253
    %v347 = vpop.f32.mrb[0].mxu0
    %v348 = vadd.f32 %v279, %v347
    %v349 = vpop.f32.mrb[0].mxu0
    %350 = vdwg.mxu0
    %v351 = vmax.f32 %v348, 0.0
    %s352 = scalar_lea.vmem %s4, 2
    %v353 = vld [vmem:[%s352] sm:$0x3]
    %355 = vset.pattern.permute.xlu0 0
    %356 = vperm.xlu0 %355, %v255
    %v357 = vpop.permute.xlu0 %356
    %v359 = vlaneseq
    %v360 = vshrl.u32 %v359, 7
    %v361 = vsub.s32 0, %v360
    %v362 = vrot.slane %v353, %v361
    %v363 = vmul.f32 %v357, %v362
    %364 = vset.pattern.permute.xlu0 1
    %365 = vperm.xlu0 %364, %v255
    %v366 = vpop.permute.xlu0 %365
    %v368 = vlaneseq
    %v369 = vshrl.u32 %v368, 7
    %v370 = vsub.s32 1, %v369
    %v371 = vrot.slane %v353, %v370
    %v372 = vmul.f32 %v366, %v371
    %v373 = vadd.f32 %v363, %v372
    %s374 = scalar_lea.vmem %s5, 1
    %v375 = vld [vmem:[%s374] sm:$0x1]
    %v377 = vlaneseq
    %v378 = vshrl.u32 %v377, 7
    %v379 = vsub.s32 0, %v378
    %v380 = vrot.slane %v375, %v379
    %v382 = vadd.f32 %v373, %v380
    %v383 = vmax.f32 %v382, 0.0
    %385 = vrot.lane.b32.xlu0 %v383, 32
    %v386 = vpop.permute.xlu0 %385
    %v388 = vsel %vm160, %v351, %v386
    %s389 = scalar_lea.vmem %s6, 64
    %v390 = vld [vmem:[%s389] sm:$0xff]
    %v391 = vld [vmem:[%s389 + $0x8] sm:$0xff]
    %v392 = vld [vmem:[%s389 + $0x10] sm:$0xff]
    %v393 = vld [vmem:[%s389 + $0x18] sm:$0xff]
    %v394 = vld [vmem:[%s389 + $0x20] sm:$0xff]
    %v395 = vld [vmem:[%s389 + $0x28] sm:$0xff]
    %v396 = vld [vmem:[%s389 + $0x30] sm:$0xff]
    %v397 = vld [vmem:[%s389 + $0x38] sm:$0xff]
    %s398 = scalar_lea.vmem %s7, 1
    %v399 = vld [vmem:[%s398] sm:$0x1]
    %v401 = vlaneseq
    %v402 = vshrl.u32 %v401, 7
    %v403 = vsub.s32 0, %v402
    %v404 = vrot.slane %v399, %v403
    %v407 = vsel %vm177, %v388, 0
    %409 = vmatprep.subr.mxu0 0.0
    %410 = vmatpush1.msra.mxu0 %v390
    %411 = vmatprep.subr.mxu0 0.0
    %412 = vmatpush1.msra.mxu0 %v391
    %413 = vmatprep.subr.mxu0 0.0
    %414 = vmatpush1.msra.mxu0 %v392
    %415 = vmatprep.subr.mxu0 0.0
    %416 = vmatpush1.msra.mxu0 %v393
    %417 = vmatprep.subr.mxu0 0.0
    %418 = vmatpush1.msra.mxu0 %v394
    %419 = vmatprep.subr.mxu0 0.0
    %420 = vmatpush1.msra.mxu0 %v395
    %421 = vmatprep.subr.mxu0 0.0
    %422 = vmatpush1.msra.mxu0 %v396
    %423 = vmatprep.subr.mxu0 0.0
    %424 = vmatpush1.msra.mxu0 %v397
    %425 = vmatprep.subr.mxu0 0.0
    %426 = vmatpush1.msra.mxu0 0.0
    %427 = vmatprep.subr.mxu0 0.0
    %428 = vmatpush1.msra.mxu0 0.0
    %429 = vmatprep.subr.mxu0 0.0
    %430 = vmatpush1.msra.mxu0 0.0
    %431 = vmatprep.subr.mxu0 0.0
    %432 = vmatpush1.msra.mxu0 0.0
    %433 = vmatprep.subr.mxu0 0.0
    %434 = vmatpush1.msra.mxu0 0.0
    %435 = vmatprep.subr.mxu0 0.0
    %436 = vmatpush1.msra.mxu0 0.0
    %437 = vmatprep.subr.mxu0 0.0
    %438 = vmatpush1.msra.mxu0 0.0
    %439 = vmatprep.subr.mxu0 0.0
    %440 = vmatpush1.msra.mxu0 0.0
    %441 = vmatprep.subr.mxu0 0.0
    %442 = vmatpush1.msra.mxu0 0.0
    %443 = vmatprep.subr.mxu0 0.0
    %444 = vmatpush1.msra.mxu0 0.0
    %445 = vmatprep.subr.mxu0 0.0
    %446 = vmatpush1.msra.mxu0 0.0
    %447 = vmatprep.subr.mxu0 0.0
    %448 = vmatpush1.msra.mxu0 0.0
    %449 = vmatprep.subr.mxu0 0.0
    %450 = vmatpush1.msra.mxu0 0.0
    %451 = vmatprep.subr.mxu0 0.0
    %452 = vmatpush1.msra.mxu0 0.0
    %453 = vmatprep.subr.mxu0 0.0
    %454 = vmatpush1.msra.mxu0 0.0
    %455 = vmatprep.subr.mxu0 0.0
    %456 = vmatpush1.msra.mxu0 0.0
    %457 = vmatprep.subr.mxu0 0.0
    %458 = vmatpush1.msra.mxu0 0.0
    %459 = vmatprep.subr.mxu0 0.0
    %460 = vmatpush1.msra.mxu0 0.0
    %461 = vmatprep.subr.mxu0 0.0
    %462 = vmatpush1.msra.mxu0 0.0
    %463 = vmatprep.subr.mxu0 0.0
    %464 = vmatpush1.msra.mxu0 0.0
    %465 = vmatprep.subr.mxu0 0.0
    %466 = vmatpush1.msra.mxu0 0.0
    %467 = vmatprep.subr.mxu0 0.0
    %468 = vmatpush1.msra.mxu0 0.0
    %469 = vmatprep.subr.mxu0 0.0
    %470 = vmatpush1.msra.mxu0 0.0
    %471 = vmatprep.subr.mxu0 0.0
    %472 = vmatpush1.msra.mxu0 0.0
    %473 = vmatprep.mubr.f32.mxu0 0.0
    %474 = vmatmul.mubr.f32.gmra.mrb[0].mxu0 %v407
    %v475 = vpop.f32.mrb[0].mxu0
    %v476 = vadd.f32 %v404, %v475
    %v477 = vpop.f32.mrb[0].mxu0
    %478 = vdwg.mxu0
    %v479 = vmax.f32 %v476, 0.0
    %481 = vrot.lane.b32.xlu0 %v479, 64
    %v482 = vpop.permute.xlu0 %481
    %v484 = vsel %vm177, %v251, %v482
    %485 = vst [vmem:[#allocation2] sm:$0x3] %v484
    // Predicated region
    $region34: #{_lambda_.1} parent=1 // pred_check
      _
    $region35: #{_lambda_.1} parent=1 // pred_check_branch
      %487 = sbr.rel (0) target = $region37
    $region36: #{_lambda_.1} parent=1 // pred_region
      %s489 = ssub.s32 32, 32
      %490 = vsyncadd [#allocation3], %s489
      %s492 = sshll.u32 [#allocation2], 4
      %s493 = int_to_ptr.vmem [resolvable:$true] %s492
      %495 = dma.vmem_to_hbm [thread:$0]  %s493, 32, %s8, [#allocation3]
    $region37: #{_lambda_.1} parent=1 // pred_fallthru
      _
    // Predicated region
    $region38: #{_lambda_.1} parent=1 // pred_check
      _
    $region39: #{_lambda_.1} parent=1 // pred_check_branch
      %497 = sbr.rel (0) target = $region41
    $region40: #{_lambda_.1} parent=1 // pred_region
      %498 = dma.done [#allocation3], 32
    $region41: #{_lambda_.1} parent=1 // pred_fallthru
      _
    %499 = vsyncpa [#allocation3], 1

</llo_original>
